<compile_context>
chip_gen: v7x
topology: tpu7x:2x2x1
jax: 0.10.0
libtpu: 0.0.40
codegen_flags: <defaults>
</compile_context>

<pallas_src>
import jax
import jax.numpy as jnp
from jax.experimental import pallas as pl
from jax.experimental.pallas import tpu as pltpu

EPS = 1e-6


def _layernorm_kernel(x_ref, a_ref, b_ref, o_ref):
    # x_ref: (tile_rows, D); a_ref/b_ref: (1, D); o_ref: (tile_rows, D)
    x = x_ref[...].astype(jnp.float32)       # no-op when input is f32
    d = x.shape[-1]

    # Two-pass moments (numerically robust); reductions go to the XLU.
    mean = jnp.mean(x, axis=-1, keepdims=True)           # (tile_rows, 1)
    diff = x - mean                                       # only full-tile temp
    var = jnp.sum(diff * diff, axis=-1, keepdims=True) * (1.0 / (d - 1))

    # All remaining scalar math stays on the (tile_rows, 1) column.
    denom = jnp.sqrt(var) + EPS
    inv = pl.reciprocal(denom, approx=True)               # EUP path
    inv = inv * (2.0 - denom * inv)                       # one Newton step

    a = a_ref[...].astype(jnp.float32)
    b = b_ref[...].astype(jnp.float32)
    o_ref[...] = (diff * inv * a + b).astype(o_ref.dtype)


def _vmem_capacity_bytes():
    try:
        return int(pltpu.get_tpu_info().vmem_capacity_bytes)
    except Exception:
        return 64 * 1024 * 1024   # v7x per-TensorCore VMEM


def _pick_tile_rows(rows, D, dtype_bytes):
    """Row-tile choice: multiple of 8, capped at 512 rows, budgeted so
    double-buffered I/O + ~4 f32 temporaries stay well inside VMEM, and
    shrunk so the grid has >= 4 steps when possible (fills both v7x TCs).
    Prefers an exact divisor of `rows` so the last block is not ragged."""
    vmem = _vmem_capacity_bytes()
    # Conservative even if the reported value is per-chip on v7x: halve and
    # then take half of that as the block budget (<= 32 MiB).
    budget = min(vmem // 2, 64 * 1024 * 1024) // 2
    # per-row footprint: 2x in + 2x out blocks (native dtype, double-buffered)
    # plus ~4 tile-sized f32 temporaries live at peak.
    per_row = D * (4 * dtype_bytes + 4 * 4)
    cap = budget // max(per_row, 1)
    cap = max(8, min(int(cap), 512))
    cap = (cap // 8) * 8

    # Keep at least 4 grid steps when the input is big enough (v7x: 2 TCs).
    if rows >= 32:
        cap = min(cap, max(8, (rows // 4 // 8) * 8))

    if rows <= cap:
        return rows            # single full-dim block (always legal)

    # Prefer a multiple-of-8 tile that divides rows exactly (no ragged tail).
    for t in range(cap, 7, -8):
        if rows % t == 0:
            return t
    return cap                 # ragged last block handled by the cdiv grid


def layer_norm(x, a_2, b_2, *, tile_rows=None):
    """x: (B, S, D); a_2, b_2: (D,). Returns (B, S, D)."""
    B, S, D = x.shape
    assert D > 1, "feature dim must be > 1 for unbiased std (divides by D-1)"
    rows = B * S
    dtype_bytes = jnp.dtype(x.dtype).itemsize

    if tile_rows is None:
        tile_rows = _pick_tile_rows(rows, D, dtype_bytes)

    num_tiles = pl.cdiv(rows, tile_rows)

    x2 = x.reshape(rows, D)   # no pad; ragged last block handled by Pallas
    a2 = a_2.reshape(1, D)
    b2 = b_2.reshape(1, D)

    # Scoped-VMEM limit: double-buffered in/out + ~4 f32 temporaries + params
    # + slack; clamped <= 56 MiB so it stays under v7x's 64 MiB/TC physical.
    block_io = tile_rows * D * dtype_bytes
    block_f32 = tile_rows * D * 4
    needed = 4 * block_io + 4 * block_f32 + 4 * D * 4 + (2 << 20)
    vmem_limit = int(min(max(needed, 32 * 1024 * 1024), 56 * 1024 * 1024))

    out = pl.pallas_call(
        _layernorm_kernel,
        out_shape=jax.ShapeDtypeStruct((rows, D), x.dtype),
        grid_spec=pltpu.PrefetchScalarGridSpec(
            num_scalar_prefetch=0,
            grid=(num_tiles,),
            in_specs=[
                pl.BlockSpec((tile_rows, D), lambda i: (i, 0)),
                pl.BlockSpec((1, D), lambda i: (0, 0)),   # a_2: fetched once
                pl.BlockSpec((1, D), lambda i: (0, 0)),   # b_2: fetched once
            ],
            out_specs=pl.BlockSpec((tile_rows, D), lambda i: (i, 0)),
        ),
        compiler_params=pltpu.CompilerParams(
            dimension_semantics=("parallel",),
            vmem_limit_bytes=vmem_limit,
        ),
    )(x2, a2, b2)

    return out.reshape(B, S, D)


if __name__ == "__main__":
    key = jax.random.PRNGKey(0)
    # D = 128 keeps the output lane-dense (unmasked vst); rows = 16 fits in a
    # single full-dim tile for this small test.
    B, S, D = 2, 8, 128
    x = jax.random.normal(key, (B, S, D), dtype=jnp.float32)

    # Deterministic parameter init matching nn.Parameter(torch.ones/zeros).
    a_2 = jnp.ones((D,), dtype=jnp.float32)
    b_2 = jnp.zeros((D,), dtype=jnp.float32)

    y = layer_norm(x, a_2, b_2)
    y = jax.block_until_ready(y)

    # Reference check in plain JAX (same unbiased-std, eps-on-std formula).
    mean = jnp.mean(x, axis=-1, keepdims=True)
    var = jnp.sum((x - mean) ** 2, axis=-1, keepdims=True) / (D - 1)
    ref = a_2 * (x - mean) / (jnp.sqrt(var) + EPS) + b_2
    assert jnp.allclose(y, ref, atol=1e-4, rtol=1e-4), (
        float(jnp.max(jnp.abs(y - ref))))

    print("KERNEL_OK")
</pallas_src>

<mosaic_0001>
module attributes {stable_mosaic.version = 11 : i64} {
  func.func @_layernorm_kernel(%arg0: i32, %arg1: memref<16x128xf32, #tpu.memory_space<vmem>>, %arg2: memref<1x128xf32, #tpu.memory_space<vmem>>, %arg3: memref<1x128xf32, #tpu.memory_space<vmem>>, %arg4: memref<16x128xf32, #tpu.memory_space<vmem>>) attributes {dimension_semantics = [#tpu.dimension_semantics<parallel>], iteration_bounds = array<i64: 1>, scalar_prefetch = 0 : i64, scratch_operands = 0 : i64, tpu.core_type = #tpu.core_type<tc>, window_params = [{transform_indices = @transform_0, window_bounds = array<i64: 16, 128>}, {pipeline_mode = #tpu.pipeline_mode<synchronous>, transform_indices = @transform_1, window_bounds = array<i64: 1, 128>}, {pipeline_mode = #tpu.pipeline_mode<synchronous>, transform_indices = @transform_2, window_bounds = array<i64: 1, 128>}, {transform_indices = @transform_3, window_bounds = array<i64: 16, 128>}]} {
    %c0 = arith.constant 0 : index
    %c0_0 = arith.constant 0 : index
    %0 = vector.load %arg1[%c0, %c0_0] : memref<16x128xf32, #tpu.memory_space<vmem>>, vector<16x128xf32>
    %cst = arith.constant dense<0.000000e+00> : vector<16xf32>
    %1 = vector.multi_reduction <add>, %0, %cst [1] : vector<16x128xf32> to vector<16xf32>
    %2 = vector.shape_cast %1 : vector<16xf32> to vector<16x1xf32>
    %cst_1 = arith.constant 1.280000e+02 : f32
    %3 = vector.broadcast %cst_1 : f32 to vector<16x1xf32>
    %4 = arith.divf %2, %3 : vector<16x1xf32>
    %5 = vector.broadcast %4 : vector<16x1xf32> to vector<16x128xf32>
    %6 = arith.subf %0, %5 : vector<16x128xf32>
    %7 = arith.mulf %6, %6 : vector<16x128xf32>
    %cst_2 = arith.constant dense<0.000000e+00> : vector<16xf32>
    %8 = vector.multi_reduction <add>, %7, %cst_2 [1] : vector<16x128xf32> to vector<16xf32>
    %9 = vector.shape_cast %8 : vector<16xf32> to vector<16x1xf32>
    %cst_3 = arith.constant 0.00787401571 : f32
    %10 = vector.broadcast %cst_3 : f32 to vector<16x1xf32>
    %11 = arith.mulf %9, %10 : vector<16x1xf32>
    %12 = math.sqrt %11 : vector<16x1xf32>
    %cst_4 = arith.constant 9.99999997E-7 : f32
    %13 = vector.broadcast %cst_4 : f32 to vector<16x1xf32>
    %14 = arith.addf %12, %13 : vector<16x1xf32>
    %15 = tpu.reciprocal %14 {approx = true} : vector<16x1xf32> -> vector<16x1xf32>
    %16 = arith.mulf %14, %15 : vector<16x1xf32>
    %cst_5 = arith.constant 2.000000e+00 : f32
    %17 = vector.broadcast %cst_5 : f32 to vector<16x1xf32>
    %18 = arith.subf %17, %16 : vector<16x1xf32>
    %19 = arith.mulf %15, %18 : vector<16x1xf32>
    %c0_6 = arith.constant 0 : index
    %c0_7 = arith.constant 0 : index
    %20 = vector.load %arg2[%c0_6, %c0_7] : memref<1x128xf32, #tpu.memory_space<vmem>>, vector<1x128xf32>
    %c0_8 = arith.constant 0 : index
    %c0_9 = arith.constant 0 : index
    %21 = vector.load %arg3[%c0_8, %c0_9] : memref<1x128xf32, #tpu.memory_space<vmem>>, vector<1x128xf32>
    %22 = vector.broadcast %19 : vector<16x1xf32> to vector<16x128xf32>
    %23 = arith.mulf %6, %22 : vector<16x128xf32>
    %24 = vector.broadcast %20 : vector<1x128xf32> to vector<16x128xf32>
    %25 = arith.mulf %23, %24 : vector<16x128xf32>
    %26 = vector.broadcast %21 : vector<1x128xf32> to vector<16x128xf32>
    %27 = arith.addf %25, %26 : vector<16x128xf32>
    %c0_10 = arith.constant 0 : index
    %c0_11 = arith.constant 0 : index
    %28 = vector.load %arg4[%c0_10, %c0_11] : memref<16x128xf32, #tpu.memory_space<vmem>>, vector<16x128xf32>
    tpu.vector_store %arg4[%c0_10, %c0_11], %27 {strides = array<i32>} : memref<16x128xf32, #tpu.memory_space<vmem>>, vector<16x128xf32>,
    return
  }
  func.func @transform_0(%arg0: i32) -> (i32, i32) {
    %c0_i32 = arith.constant 0 : i32
    %c0_i32_0 = arith.constant 0 : i32
    return %arg0, %c0_i32 : i32, i32
  }
  func.func @transform_1(%arg0: i32) -> (i32, i32) {
    %c0_i32 = arith.constant 0 : i32
    %c0_i32_0 = arith.constant 0 : i32
    %c0_i32_1 = arith.constant 0 : i32
    return %c0_i32, %c0_i32_0 : i32, i32
  }
  func.func @transform_2(%arg0: i32) -> (i32, i32) {
    %c0_i32 = arith.constant 0 : i32
    %c0_i32_0 = arith.constant 0 : i32
    %c0_i32_1 = arith.constant 0 : i32
    return %c0_i32, %c0_i32_0 : i32, i32
  }
  func.func @transform_3(%arg0: i32) -> (i32, i32) {
    %c0_i32 = arith.constant 0 : i32
    %c0_i32_0 = arith.constant 0 : i32
    return %arg0, %c0_i32 : i32, i32
  }
}

</mosaic_0001>

<llo_original>
// kernel: tpu_custom_call.1
$region0: #{tpu_custom_call.1}
  #allocation0 [shape = 'u32[]', space=smem, size = 0x4, offset = 0x4, fixed_abs, tag = 'smem constant byte address 0x4 - core index']
  #allocation1 [shape = 'u32[144,128]{1,0:T(1,128)}', space=vmem, size = 0x12000, scoped, tag = 'internal scratch']
  %s0 = inlined_call_operand.hbm [shape: f32[16,128], index: 0, kind: input, shape index: {}]
  %s1 = inlined_call_operand.vmem [shape: f32[1,128], index: 1, kind: input, shape index: {}]
  %s2 = inlined_call_operand.vmem [shape: f32[1,128], index: 2, kind: input, shape index: {}]
  %s3 = inlined_call_operand.hbm [shape: f32[16,128], index: 3, kind: output, shape index: {}]
  %s4 = sld [smem:[#allocation0]]
  $region26: #{tpu_custom_call.1} parent=0
    _
  %s6 = ssub.s32 1, %s4
  %s7 = scalar_select 0, %s6, %s4
  $region1: #{tpu_custom_call.1} parent=0
    #allocation2 [shape = 'u8[8192]{0}', space=vmem, size = 0x2000, scoped, tag = 'input window, operand 0, single buffered']
    #allocation3 [shape = 's32[1]{0}', space=sflag, size = 0x4, scoped, tag = 'scoped memory for tpu_custom_call.1']
    #allocation4 [shape = 's32[1]{0}', space=sflag, size = 0x4, scoped, tag = 'scoped memory for tpu_custom_call.1']
    #allocation5 [shape = 'u8[8192]{0}', space=vmem, size = 0x2000, scoped, tag = 'output window, operand 0, single buffered']
    %8 = vsyncpa [#allocation3], 0
    %9 = vsyncpa [#allocation4], 0
    // Predicated region
    $region2: #{tpu_custom_call.1} parent=1 // pred_check
      _
    $region3: #{tpu_custom_call.1} parent=1 // pred_check_branch
      %11 = sbr.rel (0) target = $region5
    $region4: #{tpu_custom_call.1} parent=1 // pred_region
      %s13 = ssub.s32 256, 256
      %14 = vsyncadd [#allocation3], %s13
      %s15 = sshll.u32 [#allocation2], 4
      %s16 = int_to_ptr.vmem [resolvable:$true] %s15
      %21 = dma.hbm_to_vmem [thread:$0]  %s0, 256, %s16, [#allocation3], 128, 128, 8
    $region5: #{tpu_custom_call.1} parent=1 // pred_fallthru
      _
    // Predicated region
    $region6: #{tpu_custom_call.1} parent=1 // pred_check
      _
    $region7: #{tpu_custom_call.1} parent=1 // pred_check_branch
      %23 = sbr.rel (0) target = $region9
    $region8: #{tpu_custom_call.1} parent=1 // pred_region
      _
    $region9: #{tpu_custom_call.1} parent=1 // pred_fallthru
      _
    // Predicated region
    $region10: #{tpu_custom_call.1} parent=1 // pred_check
      _
    $region11: #{tpu_custom_call.1} parent=1 // pred_check_branch
      %25 = sbr.rel (0) target = $region13
    $region12: #{tpu_custom_call.1} parent=1 // pred_region
      _
    $region13: #{tpu_custom_call.1} parent=1 // pred_fallthru
      _
    // Predicated region
    $region14: #{tpu_custom_call.1} parent=1 // pred_check
      _
    $region15: #{tpu_custom_call.1} parent=1 // pred_check_branch
      %27 = sbr.rel (0) target = $region17
    $region16: #{tpu_custom_call.1} parent=1 // pred_region
      %28 = dma.done [#allocation3], 256
    $region17: #{tpu_custom_call.1} parent=1 // pred_fallthru
      _
    %v29 = vld [vmem:[#allocation2] sm:$0xff]
    %v30 = vld [vmem:[#allocation2 + $0x8] sm:$0xff]
    %31 = vadd.xlane.f32.xlu0 %v29
    %v32 = vpop.xlane.xlu0 %31
    %33 = vadd.xlane.f32.xlu0 %v30
    %v34 = vpop.xlane.xlu0 %33
    %v35 = vrcp.pop 128.0
    %v36 = vmul.f32 %v32, %v35
    %v37 = vmul.f32 %v34, %v35
    %v38 = vsub.f32 %v29, %v36
    %v39 = vsub.f32 %v30, %v37
    %v40 = vmul.f32 %v38, %v38
    %v41 = vmul.f32 %v39, %v39
    %42 = vadd.xlane.f32.xlu0 %v40
    %v43 = vpop.xlane.xlu0 %42
    %44 = vadd.xlane.f32.xlu0 %v41
    %v45 = vpop.xlane.xlu0 %44
    %v46 = vmul.f32 %v43, 0.007874016
    %v47 = vmul.f32 %v45, 0.007874016
    %v48 = vrsqrt.pop %v46
    %v49 = vmul.f32 %v46, %v48
    %vm50 = vcmp.eq.f32.partialorder %v46, inf
    %v51 = vsel %vm50, %v46, %v49
    %vm52 = vcmp.eq.f32.partialorder %v46, 0.0
    %v53 = vand.u32 %v46, 2147483648
    %v54 = vsel %vm52, %v53, %v51
    %v55 = vrsqrt.pop %v47
    %v56 = vmul.f32 %v47, %v55
    %vm57 = vcmp.eq.f32.partialorder %v47, inf
    %v58 = vsel %vm57, %v47, %v56
    %vm59 = vcmp.eq.f32.partialorder %v47, 0.0
    %v60 = vand.u32 %v47, 2147483648
    %v61 = vsel %vm59, %v60, %v58
    %v62 = vadd.f32 %v54, 1e-06
    %v63 = vadd.f32 %v61, 1e-06
    %v64 = vrcp.pop %v62
    %v65 = vrcp.pop %v63
    %v66 = vmul.f32 %v62, %v64
    %v67 = vmul.f32 %v63, %v65
    %v68 = vsub.f32 2.0, %v66
    %v69 = vsub.f32 2.0, %v67
    %v70 = vmul.f32 %v64, %v68
    %v71 = vmul.f32 %v65, %v69
    %v72 = vld [vmem:[%s1] sm:$0x1]
    %v73 = vld [vmem:[%s2] sm:$0x1]
    %v74 = vmul.f32 %v38, %v70
    %v75 = vmul.f32 %v39, %v71
    %v77 = vlaneseq
    %v78 = vshrl.u32 %v77, 7
    %v79 = vsub.s32 0, %v78
    %v80 = vrot.slane %v72, %v79
    %v82 = vmul.f32 %v74, %v80
    %v83 = vmul.f32 %v75, %v80
    %v85 = vlaneseq
    %v86 = vshrl.u32 %v85, 7
    %v87 = vsub.s32 0, %v86
    %v88 = vrot.slane %v73, %v87
    %v90 = vadd.f32 %v82, %v88
    %v91 = vadd.f32 %v83, %v88
    %92 = vst [vmem:[#allocation5] sm:$0xff] %v90
    %93 = vst [vmem:[#allocation5 + $0x8] sm:$0xff] %v91
    // Predicated region
    $region18: #{tpu_custom_call.1} parent=1 // pred_check
      _
    $region19: #{tpu_custom_call.1} parent=1 // pred_check_branch
      %95 = sbr.rel (0) target = $region21
    $region20: #{tpu_custom_call.1} parent=1 // pred_region
      %s97 = ssub.s32 256, 256
      %98 = vsyncadd [#allocation4], %s97
      %s99 = sshll.u32 [#allocation5], 4
      %s100 = int_to_ptr.vmem [resolvable:$true] %s99
      %105 = dma.vmem_to_hbm [thread:$0]  %s100, 256, %s3, [#allocation4], 128, 128, 8
    $region21: #{tpu_custom_call.1} parent=1 // pred_fallthru
      _
    // Predicated region
    $region22: #{tpu_custom_call.1} parent=1 // pred_check
      _
    $region23: #{tpu_custom_call.1} parent=1 // pred_check_branch
      %107 = sbr.rel (0) target = $region25
    $region24: #{tpu_custom_call.1} parent=1 // pred_region
      %108 = dma.done [#allocation4], 256
    $region25: #{tpu_custom_call.1} parent=1 // pred_fallthru
      _
    %109 = vsyncpa [#allocation3], 1
    %110 = vsyncpa [#allocation4], 1

</llo_original>
